<compile_context>
chip_gen: v7x
topology: tpu7x:2x2x1
jax: 0.10.0
libtpu: 0.0.40
codegen_flags: <defaults>
</compile_context>

<pallas_src>
import functools
import typing as _typing

import jax
import jax.numpy as jnp
from jax.experimental import pallas as pl
from jax.experimental.pallas import tpu as pltpu

NEG_SLOPE = 0.2                       # GATConv default negative_slope
_VMEM_LIMIT_BYTES = 32 * 1024 * 1024  # safe on v5e/v6e/v7x (raises v5e's 16MiB default)
_VMEM_TILE_BUDGET = 24 * 1024 * 1024  # working-set budget used to size dst tiles
_TILE_CAP = 512                       # diminishing returns past ~512 rows


def _round_up(x: int, m: int) -> int:
    return ((x + m - 1) // m) * m


def _choose_tile_dst(n: int) -> int:
    """Pick a dst-row tile so the [tile, N] working set fits scoped VMEM on all
    generations (v7x has only 64 MiB physical / 32 MiB default scoped VMEM)."""
    # per dst row: 2x int8 adj buffers (2*n) + ~3 live f32 [tile, n] temporaries (12*n)
    per_row = 16 * max(n, 1)
    tile = _VMEM_TILE_BUDGET // per_row
    tile = max(8, min(_TILE_CAP, (tile // 8) * 8))
    return min(tile, _round_up(n, 8))


# --------------------------------------------------------------------------- #
# Kernels
# --------------------------------------------------------------------------- #
def _gat_linear_kernel(x_ref, w_ref, asm_ref, adm_ref, h_ref, ssrc_ref, sdst_ref):
    """h = x @ W (bf16 MXU, f32 acc) + per-head attention scores via block-diag matmuls."""
    x = x_ref[...].astype(jnp.bfloat16)
    w = w_ref[...].astype(jnp.bfloat16)
    h = jnp.dot(x, w, preferred_element_type=jnp.float32)            # [T, H*F] f32
    # scores[n, hd] = sum_f h[n, hd*F + f] * att[hd, f]  (block-diag projection)
    ssrc_ref[...] = jnp.dot(h, asm_ref[...], preferred_element_type=jnp.float32)
    sdst_ref[...] = jnp.dot(h, adm_ref[...], preferred_element_type=jnp.float32)
    h_ref[...] = h.astype(jnp.bfloat16)


def _gat_attn_kernel(h_ref, ssrc_t_ref, sdst_ref, adj_ref, bias_ref, out_ref, *,
                     heads: int, f_out: int, concat: bool,
                     apply_act: bool, act: _typing.Optional[str]):
    # h_ref:      [N_src, H*F]   bf16, resident across dst tiles
    # ssrc_t_ref: [H, N_src]     f32,  resident (source attention scores, transposed)
    # sdst_ref:   [T_dst, H]     f32,  tiled over dst rows
    # adj_ref:    [T_dst, N_src] int8, tiled over dst rows
    # bias_ref:   [1, out_dim]   f32,  resident
    mask = adj_ref[...].astype(jnp.float32) > 0.0          # [T, N]
    h_all = h_ref[...]                                     # bf16
    neg_big = jnp.float32(-1e30)

    head_outs = []
    for hd in range(heads):                                # static, small H
        a_src = ssrc_t_ref[hd:hd + 1, :]                   # [1, N]
        a_dst = sdst_ref[:, hd:hd + 1]                     # [T, 1]
        e = a_dst + a_src                                  # e[d, s]
        e = jnp.where(e > 0, e, NEG_SLOPE * e)             # LeakyReLU
        e = jnp.where(mask, e, neg_big)                    # single masking pass
        m = jnp.max(e, axis=-1, keepdims=True)
        p = jnp.exp(e - m)                                 # masked entries underflow to 0
        denom = jnp.sum(p, axis=-1, keepdims=True)
        inv = pl.reciprocal(denom, approx=True)            # EUP slot; deferred softmax norm
        hf = h_all[:, hd * f_out:(hd + 1) * f_out]         # [N, F] bf16
        agg = jnp.dot(p.astype(jnp.bfloat16), hf,
                      preferred_element_type=jnp.float32)  # [T, F]
        head_outs.append(agg * inv)                        # normalize after the matmul

    if concat:
        out = jnp.concatenate(head_outs, axis=-1)          # [T, H*F]
    else:
        out = head_outs[0]
        for ho in head_outs[1:]:
            out = out + ho
        out = out * (1.0 / heads)                          # [T, F]
    out = out + bias_ref[...]

    if apply_act:
        if act == "relu":
            out = jnp.maximum(out, 0.0)
        elif act == "elu":
            # clamp exp argument so the dead branch never produces inf
            out = jnp.where(out > 0, out, jnp.exp(jnp.minimum(out, 0.0)) - 1.0)
        elif act == "leaky_relu":
            out = jnp.where(out > 0, out, 0.01 * out)
        elif act == "tanh":
            out = jnp.tanh(out)
        elif act == "sigmoid":
            out = 1.0 / (1.0 + jnp.exp(-out))
        # act is None / "linear": identity

    out_ref[...] = out.astype(out_ref.dtype)


# --------------------------------------------------------------------------- #
# Layer wrapper
# --------------------------------------------------------------------------- #
def gat_layer(x, w, a_src_mat, a_dst_mat, bias, adj_pad_i8, *, heads, f_out,
              concat, apply_act, act, tile, n_true):
    n_pad = adj_pad_i8.shape[0]
    f_in = x.shape[1]
    hf_dim = heads * f_out
    out_dim = hf_dim if concat else f_out

    x_p = x
    if x.shape[0] < n_pad:
        x_p = jnp.pad(x, ((0, n_pad - x.shape[0]), (0, 0)))

    grid = (n_pad // tile,)
    cparams = pltpu.CompilerParams(
        dimension_semantics=("parallel",),       # shard dst tiles across TCs (v7x megacore)
        vmem_limit_bytes=_VMEM_LIMIT_BYTES,
    )

    # --- kernel 1: feature transform + attention scores (computed once per layer) ---
    h_bf16, ssrc, sdst = pl.pallas_call(
        _gat_linear_kernel,
        grid=grid,
        out_shape=(
            jax.ShapeDtypeStruct((n_pad, hf_dim), jnp.bfloat16),
            jax.ShapeDtypeStruct((n_pad, heads), jnp.float32),
            jax.ShapeDtypeStruct((n_pad, heads), jnp.float32),
        ),
        in_specs=[
            pl.BlockSpec((tile, f_in), lambda i: (i, 0)),
            pl.BlockSpec((f_in, hf_dim), lambda i: (0, 0)),
            pl.BlockSpec((hf_dim, heads), lambda i: (0, 0)),
            pl.BlockSpec((hf_dim, heads), lambda i: (0, 0)),
        ],
        out_specs=(
            pl.BlockSpec((tile, hf_dim), lambda i: (i, 0)),
            pl.BlockSpec((tile, heads), lambda i: (i, 0)),
            pl.BlockSpec((tile, heads), lambda i: (i, 0)),
        ),
        compiler_params=cparams,
    )(x_p, w, a_src_mat, a_dst_mat)

    # Small [N, H] -> [H, N] transpose done once in XLA so the kernel broadcasts
    # source scores along lanes without an in-kernel transpose.
    ssrc_t = ssrc.T

    # --- kernel 2: masked softmax + aggregation, tiled over dst rows ---
    attn = functools.partial(_gat_attn_kernel, heads=heads, f_out=f_out,
                             concat=concat, apply_act=apply_act, act=act)
    out_p = pl.pallas_call(
        attn,
        grid=grid,
        out_shape=jax.ShapeDtypeStruct((n_pad, out_dim), jnp.float32),
        in_specs=[
            pl.BlockSpec((n_pad, hf_dim), lambda i: (0, 0)),   # h: resident
            pl.BlockSpec((heads, n_pad), lambda i: (0, 0)),    # src scores: resident
            pl.BlockSpec((tile, heads), lambda i: (i, 0)),     # dst scores: per tile
            pl.BlockSpec((tile, n_pad), lambda i: (i, 0)),     # adj: per tile (int8)
            pl.BlockSpec((1, out_dim), lambda i: (0, 0)),      # bias: resident
        ],
        out_specs=pl.BlockSpec((tile, out_dim), lambda i: (i, 0)),
        compiler_params=cparams,
    )(h_bf16, ssrc_t, sdst, adj_pad_i8, bias)

    return out_p[:n_true] if n_pad > n_true else out_p


# --------------------------------------------------------------------------- #
# Module
# --------------------------------------------------------------------------- #
class GATUtils:
    @classmethod
    def to_total_hidden_dimensions(cls, per_head_output_dimensions, num_hidden_heads,
                                   num_output_heads, concat_last: bool = False):
        return [d * (num_hidden_heads if layer < len(per_head_output_dimensions) - 1
                     else num_output_heads if concat_last else 1)
                for layer, d in enumerate(per_head_output_dimensions)]


class GATPallas:
    """JAX/Pallas re-implementation of AutoGL `_GAT` (eval-mode forward)."""

    def __init__(self, input_dimension: int,
                 per_head_output_dimensions: _typing.Sequence[int],
                 num_hidden_heads: int, num_output_heads: int,
                 dropout: float, act: _typing.Optional[str],
                 concat_last: bool = True, *, key):
        self._dropout = dropout          # eval mode -> identity
        self._act = act
        num_layers = len(per_head_output_dimensions)
        totals = GATUtils.to_total_hidden_dimensions(
            per_head_output_dimensions, num_hidden_heads, num_output_heads,
            concat_last=concat_last)

        self.layers = []
        for layer in range(num_layers):
            in_dim = input_dimension if layer == 0 else totals[layer - 1]
            f_out = per_head_output_dimensions[layer]
            heads = num_hidden_heads if layer < num_layers - 1 else num_output_heads
            concat = True if (layer < num_layers - 1 or concat_last) else False

            key, k_w, k_as, k_ad = jax.random.split(key, 4)
            scale_w = (2.0 / (in_dim + heads * f_out)) ** 0.5
            w = scale_w * jax.random.normal(k_w, (in_dim, heads * f_out), jnp.float32)
            scale_a = (2.0 / (f_out + 1)) ** 0.5
            att_src = scale_a * jax.random.normal(k_as, (heads, f_out), jnp.float32)
            att_dst = scale_a * jax.random.normal(k_ad, (heads, f_out), jnp.float32)

            # Block-diagonal score projections [H*F, H]: one lane-dense MXU matmul
            # replaces per-head 8-lane VPU reductions.
            a_src_mat = jnp.zeros((heads * f_out, heads), jnp.float32)
            a_dst_mat = jnp.zeros((heads * f_out, heads), jnp.float32)
            for hd in range(heads):
                a_src_mat = a_src_mat.at[hd * f_out:(hd + 1) * f_out, hd].set(att_src[hd])
                a_dst_mat = a_dst_mat.at[hd * f_out:(hd + 1) * f_out, hd].set(att_dst[hd])

            bias_dim = heads * f_out if concat else f_out
            bias = jnp.zeros((1, bias_dim), jnp.float32)

            self.layers.append(dict(w=w, att_src=att_src, att_dst=att_dst,
                                    a_src_mat=a_src_mat, a_dst_mat=a_dst_mat,
                                    bias=bias, heads=heads, f_out=f_out,
                                    concat=concat))

    def __call__(self, x, adj):
        # TODO(synk): edge_weight is accepted by _GAT.forward but ignored by
        # GATConv (edge_dim=None); it is not modeled here.
        n = x.shape[0]
        tile = _choose_tile_dst(n)
        n_pad = _round_up(n, tile)
        adj_i8 = (adj > 0).astype(jnp.int8)
        if n_pad > n:
            adj_i8 = jnp.pad(adj_i8, ((0, n_pad - n), (0, n_pad - n)))

        results = [x]
        n_layers = len(self.layers)
        for layer, p in enumerate(self.layers):
            # torch.nn.functional.dropout(x, p, training=False) -> identity
            x = gat_layer(x, p["w"], p["a_src_mat"], p["a_dst_mat"], p["bias"], adj_i8,
                          heads=p["heads"], f_out=p["f_out"], concat=p["concat"],
                          apply_act=(layer < n_layers - 1), act=self._act,
                          tile=tile, n_true=n)
            results.append(x)
        return results


# --------------------------------------------------------------------------- #
# Pure-JAX reference (f32) for validation
# --------------------------------------------------------------------------- #
def _gat_reference(x, adj, layers, act):
    results = [x]
    n_layers = len(layers)
    mask = adj > 0
    for li, p in enumerate(layers):
        h_count, f = p["heads"], p["f_out"]
        h = (x @ p["w"]).reshape(x.shape[0], h_count, f)
        a_src = jnp.einsum("nhf,hf->nh", h, p["att_src"])
        a_dst = jnp.einsum("nhf,hf->nh", h, p["att_dst"])
        e = a_dst[:, None, :] + a_src[None, :, :]          # [dst, src, H]
        e = jnp.where(e > 0, e, NEG_SLOPE * e)
        e = jnp.where(mask[:, :, None], e, -1e30)
        e = e - e.max(axis=1, keepdims=True)
        pexp = jnp.exp(e) * mask[:, :, None]
        alpha = pexp / pexp.sum(axis=1, keepdims=True)
        out = jnp.einsum("dsh,shf->dhf", alpha, h)
        out = out.reshape(x.shape[0], h_count * f) if p["concat"] else out.mean(axis=1)
        out = out + p["bias"]
        if li < n_layers - 1:
            if act == "elu":
                out = jnp.where(out > 0, out, jnp.exp(jnp.minimum(out, 0.0)) - 1.0)
            elif act == "relu":
                out = jnp.maximum(out, 0.0)
            elif act == "tanh":
                out = jnp.tanh(out)
            elif act == "sigmoid":
                out = jax.nn.sigmoid(out)
        results.append(out)
        x = out
    return results


if __name__ == "__main__":
    key = jax.random.PRNGKey(0)
    k_x, k_src, k_dst, k_params = jax.random.split(key, 4)

    N, F_IN = 16, 16
    NUM_EDGES = 48

    x = jax.random.normal(k_x, (N, F_IN), jnp.float32)

    # Deterministic random edge_index -> dense adjacency adj[dst, src]
    src = jax.random.randint(k_src, (NUM_EDGES,), 0, N)
    dst = jax.random.randint(k_dst, (NUM_EDGES,), 0, N)
    adj = jnp.zeros((N, N), jnp.float32).at[dst, src].set(1.0)
    idx = jnp.arange(N)
    adj = adj.at[idx, idx].set(1.0)   # GATConv add_self_loops=True

    model = GATPallas(
        input_dimension=F_IN,
        per_head_output_dimensions=[8, 8],
        num_hidden_heads=4,
        num_output_heads=2,
        dropout=0.5,
        act="elu",
        concat_last=True,
        key=k_params,
    )

    results = model(x, adj)
    jax.block_until_ready(results)

    assert results[0].shape == (N, F_IN)
    assert results[1].shape == (N, 8 * 4)   # hidden layer: concat 4 heads
    assert results[2].shape == (N, 8 * 2)   # output layer: concat 2 heads
    assert all(bool(jnp.all(jnp.isfinite(r))) for r in results)

    # Numerical check against a pure-JAX f32 reference (bf16 matmuls + approx
    # reciprocal in the kernel -> generous tolerance).
    ref = _gat_reference(x, adj, model.layers, model._act)
    for got, want in zip(results[1:], ref[1:]):
        err = float(jnp.max(jnp.abs(got - want)))
        assert err < 1e-1, f"max abs err {err}"

    print("KERNEL_OK")
</pallas_src>

<mosaic_0001>
module attributes {stable_mosaic.version = 11 : i64} {
  func.func @_gat_linear_kernel(%arg0: i32, %arg1: memref<16x16xf32, #tpu.memory_space<vmem>>, %arg2: memref<16x32xf32, #tpu.memory_space<vmem>>, %arg3: memref<32x4xf32, #tpu.memory_space<vmem>>, %arg4: memref<32x4xf32, #tpu.memory_space<vmem>>, %arg5: memref<16x32xbf16, #tpu.memory_space<vmem>>, %arg6: memref<16x4xf32, #tpu.memory_space<vmem>>, %arg7: memref<16x4xf32, #tpu.memory_space<vmem>>) attributes {dimension_semantics = [#tpu.dimension_semantics<parallel>], iteration_bounds = array<i64: 1>, scalar_prefetch = 0 : i64, scratch_operands = 0 : i64, tpu.core_type = #tpu.core_type<tc>, window_params = [{transform_indices = @transform_0, window_bounds = array<i64: 16, 16>}, {pipeline_mode = #tpu.pipeline_mode<synchronous>, transform_indices = @transform_1, window_bounds = array<i64: 16, 32>}, {pipeline_mode = #tpu.pipeline_mode<synchronous>, transform_indices = @transform_2, window_bounds = array<i64: 32, 4>}, {pipeline_mode = #tpu.pipeline_mode<synchronous>, transform_indices = @transform_3, window_bounds = array<i64: 32, 4>}, {transform_indices = @transform_4, window_bounds = array<i64: 16, 32>}, {transform_indices = @transform_5, window_bounds = array<i64: 16, 4>}, {transform_indices = @transform_6, window_bounds = array<i64: 16, 4>}]} {
    %c0 = arith.constant 0 : index
    %c0_0 = arith.constant 0 : index
    %0 = vector.load %arg1[%c0, %c0_0] : memref<16x16xf32, #tpu.memory_space<vmem>>, vector<16x16xf32>
    %1 = arith.truncf %0 : vector<16x16xf32> to vector<16x16xbf16>
    %c0_1 = arith.constant 0 : index
    %c0_2 = arith.constant 0 : index
    %2 = vector.load %arg2[%c0_1, %c0_2] : memref<16x32xf32, #tpu.memory_space<vmem>>, vector<16x32xf32>
    %3 = arith.truncf %2 : vector<16x32xf32> to vector<16x32xbf16>
    %cst = arith.constant dense<0.000000e+00> : vector<16x32xf32>
    %4 = tpu.matmul %1, %3, %cst {dimension_numbers = #tpu.dot_dimension_numbers<[1], [0], [0], [1], [0, 0, 1, 1], [], []>} : vector<16x16xbf16>, vector<16x32xbf16>, vector<16x32xf32> -> vector<16x32xf32>
    %c0_3 = arith.constant 0 : index
    %c0_4 = arith.constant 0 : index
    %5 = vector.load %arg3[%c0_3, %c0_4] : memref<32x4xf32, #tpu.memory_space<vmem>>, vector<32x4xf32>
    %cst_5 = arith.constant dense<0.000000e+00> : vector<16x4xf32>
    %6 = tpu.matmul %4, %5, %cst_5 {dimension_numbers = #tpu.dot_dimension_numbers<[1], [0], [0], [1], [0, 0, 1, 1], [], []>} : vector<16x32xf32>, vector<32x4xf32>, vector<16x4xf32> -> vector<16x4xf32>
    %c0_6 = arith.constant 0 : index
    %c0_7 = arith.constant 0 : index
    %7 = vector.load %arg6[%c0_6, %c0_7] : memref<16x4xf32, #tpu.memory_space<vmem>>, vector<16x4xf32>
    tpu.vector_store %arg6[%c0_6, %c0_7], %6 {strides = array<i32>} : memref<16x4xf32, #tpu.memory_space<vmem>>, vector<16x4xf32>,
    %c0_8 = arith.constant 0 : index
    %c0_9 = arith.constant 0 : index
    %8 = vector.load %arg4[%c0_8, %c0_9] : memref<32x4xf32, #tpu.memory_space<vmem>>, vector<32x4xf32>
    %cst_10 = arith.constant dense<0.000000e+00> : vector<16x4xf32>
    %9 = tpu.matmul %4, %8, %cst_10 {dimension_numbers = #tpu.dot_dimension_numbers<[1], [0], [0], [1], [0, 0, 1, 1], [], []>} : vector<16x32xf32>, vector<32x4xf32>, vector<16x4xf32> -> vector<16x4xf32>
    %c0_11 = arith.constant 0 : index
    %c0_12 = arith.constant 0 : index
    %10 = vector.load %arg7[%c0_11, %c0_12] : memref<16x4xf32, #tpu.memory_space<vmem>>, vector<16x4xf32>
    tpu.vector_store %arg7[%c0_11, %c0_12], %9 {strides = array<i32>} : memref<16x4xf32, #tpu.memory_space<vmem>>, vector<16x4xf32>,
    %11 = arith.truncf %4 : vector<16x32xf32> to vector<16x32xbf16>
    %c0_13 = arith.constant 0 : index
    %c0_14 = arith.constant 0 : index
    %12 = vector.load %arg5[%c0_13, %c0_14] : memref<16x32xbf16, #tpu.memory_space<vmem>>, vector<16x32xbf16>
    tpu.vector_store %arg5[%c0_13, %c0_14], %11 {strides = array<i32>} : memref<16x32xbf16, #tpu.memory_space<vmem>>, vector<16x32xbf16>,
    return
  }
  func.func @transform_0(%arg0: i32) -> (i32, i32) {
    %c0_i32 = arith.constant 0 : i32
    %c0_i32_0 = arith.constant 0 : i32
    return %arg0, %c0_i32 : i32, i32
  }
  func.func @transform_1(%arg0: i32) -> (i32, i32) {
    %c0_i32 = arith.constant 0 : i32
    %c0_i32_0 = arith.constant 0 : i32
    %c0_i32_1 = arith.constant 0 : i32
    return %c0_i32, %c0_i32_0 : i32, i32
  }
  func.func @transform_2(%arg0: i32) -> (i32, i32) {
    %c0_i32 = arith.constant 0 : i32
    %c0_i32_0 = arith.constant 0 : i32
    %c0_i32_1 = arith.constant 0 : i32
    return %c0_i32, %c0_i32_0 : i32, i32
  }
  func.func @transform_3(%arg0: i32) -> (i32, i32) {
    %c0_i32 = arith.constant 0 : i32
    %c0_i32_0 = arith.constant 0 : i32
    %c0_i32_1 = arith.constant 0 : i32
    return %c0_i32, %c0_i32_0 : i32, i32
  }
  func.func @transform_4(%arg0: i32) -> (i32, i32) {
    %c0_i32 = arith.constant 0 : i32
    %c0_i32_0 = arith.constant 0 : i32
    return %arg0, %c0_i32 : i32, i32
  }
  func.func @transform_5(%arg0: i32) -> (i32, i32) {
    %c0_i32 = arith.constant 0 : i32
    %c0_i32_0 = arith.constant 0 : i32
    return %arg0, %c0_i32 : i32, i32
  }
  func.func @transform_6(%arg0: i32) -> (i32, i32) {
    %c0_i32 = arith.constant 0 : i32
    %c0_i32_0 = arith.constant 0 : i32
    return %arg0, %c0_i32 : i32, i32
  }
}

</mosaic_0001>

<llo_original>
// kernel: tpu_custom_call.1
$region0: #{tpu_custom_call.1}
  #allocation0 [shape = 'u32[]', space=smem, size = 0x4, offset = 0x4, fixed_abs, tag = 'smem constant byte address 0x4 - core index']
  #allocation1 [shape = 'u32[144,128]{1,0:T(1,128)}', space=vmem, size = 0x12000, scoped, tag = 'internal scratch']
  %s0 = inlined_call_operand.vmem [shape: f32[16,16], index: 0, kind: input, shape index: {}]
  %s1 = inlined_call_operand.vmem [shape: f32[16,32], index: 1, kind: input, shape index: {}]
  %s2 = inlined_call_operand.vmem [shape: f32[32,4], index: 2, kind: input, shape index: {}]
  %s3 = inlined_call_operand.vmem [shape: f32[32,4], index: 3, kind: input, shape index: {}]
  %s4 = inlined_call_operand.hbm [shape: bf16[16,32], index: 4, kind: output, shape index: {0}]
  %s5 = inlined_call_operand.vmem [shape: f32[16,4], index: 5, kind: output, shape index: {1}]
  %s6 = inlined_call_operand.vmem [shape: f32[16,4], index: 6, kind: output, shape index: {2}]
  %7 = xla_tuple %s4, %s5, %s6
  %s8 = sld [smem:[#allocation0]]
  $region42: #{tpu_custom_call.1} parent=0
    _
  %s10 = ssub.s32 1, %s8
  %s11 = scalar_select 0, %s10, %s8
  $region1: #{tpu_custom_call.1} parent=0
    #allocation2 [shape = 'u8[4096]{0}', space=vmem, size = 0x1000, scoped, tag = 'output window, operand 0, single buffered']
    #allocation3 [shape = 's32[1]{0}', space=sflag, size = 0x4, scoped, tag = 'scoped memory for tpu_custom_call.1']
    %12 = vsyncpa [#allocation3], 0
    // Predicated region
    $region2: #{tpu_custom_call.1} parent=1 // pred_check
      _
    $region3: #{tpu_custom_call.1} parent=1 // pred_check_branch
      %14 = sbr.rel (0) target = $region5
    $region4: #{tpu_custom_call.1} parent=1 // pred_region
      _
    $region5: #{tpu_custom_call.1} parent=1 // pred_fallthru
      _
    // Predicated region
    $region6: #{tpu_custom_call.1} parent=1 // pred_check
      _
    $region7: #{tpu_custom_call.1} parent=1 // pred_check_branch
      %16 = sbr.rel (0) target = $region9
    $region8: #{tpu_custom_call.1} parent=1 // pred_region
      _
    $region9: #{tpu_custom_call.1} parent=1 // pred_fallthru
      _
    // Predicated region
    $region10: #{tpu_custom_call.1} parent=1 // pred_check
      _
    $region11: #{tpu_custom_call.1} parent=1 // pred_check_branch
      %18 = sbr.rel (0) target = $region13
    $region12: #{tpu_custom_call.1} parent=1 // pred_region
      _
    $region13: #{tpu_custom_call.1} parent=1 // pred_fallthru
      _
    // Predicated region
    $region14: #{tpu_custom_call.1} parent=1 // pred_check
      _
    $region15: #{tpu_custom_call.1} parent=1 // pred_check_branch
      %20 = sbr.rel (0) target = $region17
    $region16: #{tpu_custom_call.1} parent=1 // pred_region
      _
    $region17: #{tpu_custom_call.1} parent=1 // pred_fallthru
      _
    %v22 = vld [vmem:[%s0] sm:$0xff]
    %v23 = vld [vmem:[%s0 + $0x8] sm:$0xff]
    %v24 = vpack.c.bf16 %v23, %v22
    %v25 = vld [vmem:[%s1] sm:$0xff]
    %v26 = vld [vmem:[%s1 + $0x8] sm:$0xff]
    %v27 = vpack.c.bf16 %v26, %v25
    %vm28 = vcmask 130048
    %v30 = vsel %vm28, %v24, 0
    %32 = vmatprep.subr.bf16.mxu0 0
    %33 = vmatpush1.bf16.msra.mxu0 %v27
    %34 = vmatprep.subr.bf16.mxu0 0
    %35 = vmatpush1.bf16.msra.mxu0 0
    %36 = vmatprep.subr.bf16.mxu0 0
    %37 = vmatpush1.bf16.msra.mxu0 0
    %38 = vmatprep.subr.bf16.mxu0 0
    %39 = vmatpush1.bf16.msra.mxu0 0
    %40 = vmatprep.subr.bf16.mxu0 0
    %41 = vmatpush1.bf16.msra.mxu0 0
    %42 = vmatprep.subr.bf16.mxu0 0
    %43 = vmatpush1.bf16.msra.mxu0 0
    %44 = vmatprep.subr.bf16.mxu0 0
    %45 = vmatpush1.bf16.msra.mxu0 0
    %46 = vmatprep.subr.bf16.mxu0 0
    %47 = vmatpush1.bf16.msra.mxu0 0
    %48 = vmatprep.subr.bf16.mxu0 0
    %49 = vmatpush1.bf16.msra.mxu0 0
    %50 = vmatprep.subr.bf16.mxu0 0
    %51 = vmatpush1.bf16.msra.mxu0 0
    %52 = vmatprep.subr.bf16.mxu0 0
    %53 = vmatpush1.bf16.msra.mxu0 0
    %54 = vmatprep.subr.bf16.mxu0 0
    %55 = vmatpush1.bf16.msra.mxu0 0
    %56 = vmatprep.subr.bf16.mxu0 0
    %57 = vmatpush1.bf16.msra.mxu0 0
    %58 = vmatprep.subr.bf16.mxu0 0
    %59 = vmatpush1.bf16.msra.mxu0 0
    %60 = vmatprep.subr.bf16.mxu0 0
    %61 = vmatpush1.bf16.msra.mxu0 0
    %62 = vmatprep.subr.bf16.mxu0 0
    %63 = vmatpush1.bf16.msra.mxu0 0
    %64 = vmatprep.mubr.bf16.mxu0 0
    %65 = vmatmul.mubr.bf16.gmra.mrb[0].mxu0 %v30
    %v66 = vpop.f32.mrb[0].mxu0
    %v67 = vadd.f32 0.0, %v66
    %v68 = vpop.f32.mrb[0].mxu0
    %v69 = vpop.f32.mrb[0].mxu0
    %v70 = vadd.f32 0.0, %v69
    %v71 = vpop.f32.mrb[0].mxu0
    %72 = vdwg.mxu0
    %v73 = vld [vmem:[%s2] sm:$0xff]
    %v74 = vld [vmem:[%s2 + $0x8] sm:$0xff]
    %v75 = vld [vmem:[%s2 + $0x10] sm:$0xff]
    %v76 = vld [vmem:[%s2 + $0x18] sm:$0xff]
    %vm77 = vcmask 261120
    %v79 = vsel %vm77, %v67, 0
    %v82 = vsel %vm77, %v70, 0
    %84 = vmatprep.subr.mxu0 0.0
    %85 = vmatpush1.msra.mxu0 %v73
    %86 = vmatprep.subr.mxu0 0.0
    %87 = vmatpush1.msra.mxu0 %v74
    %88 = vmatprep.subr.mxu0 0.0
    %89 = vmatpush1.msra.mxu0 %v75
    %90 = vmatprep.subr.mxu0 0.0
    %91 = vmatpush1.msra.mxu0 %v76
    %92 = vmatprep.subr.mxu0 0.0
    %93 = vmatpush1.msra.mxu0 0.0
    %94 = vmatprep.subr.mxu0 0.0
    %95 = vmatpush1.msra.mxu0 0.0
    %96 = vmatprep.subr.mxu0 0.0
    %97 = vmatpush1.msra.mxu0 0.0
    %98 = vmatprep.subr.mxu0 0.0
    %99 = vmatpush1.msra.mxu0 0.0
    %100 = vmatprep.subr.mxu0 0.0
    %101 = vmatpush1.msra.mxu0 0.0
    %102 = vmatprep.subr.mxu0 0.0
    %103 = vmatpush1.msra.mxu0 0.0
    %104 = vmatprep.subr.mxu0 0.0
    %105 = vmatpush1.msra.mxu0 0.0
    %106 = vmatprep.subr.mxu0 0.0
    %107 = vmatpush1.msra.mxu0 0.0
    %108 = vmatprep.subr.mxu0 0.0
    %109 = vmatpush1.msra.mxu0 0.0
    %110 = vmatprep.subr.mxu0 0.0
    %111 = vmatpush1.msra.mxu0 0.0
    %112 = vmatprep.subr.mxu0 0.0
    %113 = vmatpush1.msra.mxu0 0.0
    %114 = vmatprep.subr.mxu0 0.0
    %115 = vmatpush1.msra.mxu0 0.0
    %116 = vmatprep.subr.mxu0 0.0
    %117 = vmatpush1.msra.mxu0 0.0
    %118 = vmatprep.subr.mxu0 0.0
    %119 = vmatpush1.msra.mxu0 0.0
    %120 = vmatprep.subr.mxu0 0.0
    %121 = vmatpush1.msra.mxu0 0.0
    %122 = vmatprep.subr.mxu0 0.0
    %123 = vmatpush1.msra.mxu0 0.0
    %124 = vmatprep.subr.mxu0 0.0
    %125 = vmatpush1.msra.mxu0 0.0
    %126 = vmatprep.subr.mxu0 0.0
    %127 = vmatpush1.msra.mxu0 0.0
    %128 = vmatprep.subr.mxu0 0.0
    %129 = vmatpush1.msra.mxu0 0.0
    %130 = vmatprep.subr.mxu0 0.0
    %131 = vmatpush1.msra.mxu0 0.0
    %132 = vmatprep.subr.mxu0 0.0
    %133 = vmatpush1.msra.mxu0 0.0
    %134 = vmatprep.subr.mxu0 0.0
    %135 = vmatpush1.msra.mxu0 0.0
    %136 = vmatprep.subr.mxu0 0.0
    %137 = vmatpush1.msra.mxu0 0.0
    %138 = vmatprep.subr.mxu0 0.0
    %139 = vmatpush1.msra.mxu0 0.0
    %140 = vmatprep.subr.mxu0 0.0
    %141 = vmatpush1.msra.mxu0 0.0
    %142 = vmatprep.subr.mxu0 0.0
    %143 = vmatpush1.msra.mxu0 0.0
    %144 = vmatprep.subr.mxu0 0.0
    %145 = vmatpush1.msra.mxu0 0.0
    %146 = vmatprep.subr.mxu0 0.0
    %147 = vmatpush1.msra.mxu0 0.0
    %148 = vmatprep.mubr.f32.mxu0 0.0
    %149 = vmatmul.mubr.f32.gmra.mrb[0].mxu0 %v79
    %v150 = vpop.f32.mrb[0].mxu0
    %v151 = vadd.f32 0.0, %v150
    %v152 = vpop.f32.mrb[0].mxu0
    %153 = vmatprep.mubr.f32.mxu0 0.0
    %154 = vmatmul.mubr.f32.gmra.mrb[0].mxu0 %v82
    %v155 = vpop.f32.mrb[0].mxu0
    %v156 = vadd.f32 0.0, %v155
    %v157 = vpop.f32.mrb[0].mxu0
    %158 = vdwg.mxu0
    %vm159 = vcmask 31744
    %160 = vst.msk [vmem:[%s5] sm:$0xff] %vm159, %v151
    %161 = vst.msk [vmem:[%s5 + $0x8] sm:$0xff] %vm159, %v156
    %v162 = vld [vmem:[%s3] sm:$0xff]
    %v163 = vld [vmem:[%s3 + $0x8] sm:$0xff]
    %v164 = vld [vmem:[%s3 + $0x10] sm:$0xff]
    %v165 = vld [vmem:[%s3 + $0x18] sm:$0xff]
    %166 = vmatprep.subr.mxu0 0.0
    %167 = vmatpush1.msra.mxu0 %v162
    %168 = vmatprep.subr.mxu0 0.0
    %169 = vmatpush1.msra.mxu0 %v163
    %170 = vmatprep.subr.mxu0 0.0
    %171 = vmatpush1.msra.mxu0 %v164
    %172 = vmatprep.subr.mxu0 0.0
    %173 = vmatpush1.msra.mxu0 %v165
    %174 = vmatprep.subr.mxu0 0.0
    %175 = vmatpush1.msra.mxu0 0.0
    %176 = vmatprep.subr.mxu0 0.0
    %177 = vmatpush1.msra.mxu0 0.0
    %178 = vmatprep.subr.mxu0 0.0
    %179 = vmatpush1.msra.mxu0 0.0
    %180 = vmatprep.subr.mxu0 0.0
    %181 = vmatpush1.msra.mxu0 0.0
    %182 = vmatprep.subr.mxu0 0.0
    %183 = vmatpush1.msra.mxu0 0.0
    %184 = vmatprep.subr.mxu0 0.0
    %185 = vmatpush1.msra.mxu0 0.0
    %186 = vmatprep.subr.mxu0 0.0
    %187 = vmatpush1.msra.mxu0 0.0
    %188 = vmatprep.subr.mxu0 0.0
    %189 = vmatpush1.msra.mxu0 0.0
    %190 = vmatprep.subr.mxu0 0.0
    %191 = vmatpush1.msra.mxu0 0.0
    %192 = vmatprep.subr.mxu0 0.0
    %193 = vmatpush1.msra.mxu0 0.0
    %194 = vmatprep.subr.mxu0 0.0
    %195 = vmatpush1.msra.mxu0 0.0
    %196 = vmatprep.subr.mxu0 0.0
    %197 = vmatpush1.msra.mxu0 0.0
    %198 = vmatprep.subr.mxu0 0.0
    %199 = vmatpush1.msra.mxu0 0.0
    %200 = vmatprep.subr.mxu0 0.0
    %201 = vmatpush1.msra.mxu0 0.0
    %202 = vmatprep.subr.mxu0 0.0
    %203 = vmatpush1.msra.mxu0 0.0
    %204 = vmatprep.subr.mxu0 0.0
    %205 = vmatpush1.msra.mxu0 0.0
    %206 = vmatprep.subr.mxu0 0.0
    %207 = vmatpush1.msra.mxu0 0.0
    %208 = vmatprep.subr.mxu0 0.0
    %209 = vmatpush1.msra.mxu0 0.0
    %210 = vmatprep.subr.mxu0 0.0
    %211 = vmatpush1.msra.mxu0 0.0
    %212 = vmatprep.subr.mxu0 0.0
    %213 = vmatpush1.msra.mxu0 0.0
    %214 = vmatprep.subr.mxu0 0.0
    %215 = vmatpush1.msra.mxu0 0.0
    %216 = vmatprep.subr.mxu0 0.0
    %217 = vmatpush1.msra.mxu0 0.0
    %218 = vmatprep.subr.mxu0 0.0
    %219 = vmatpush1.msra.mxu0 0.0
    %220 = vmatprep.subr.mxu0 0.0
    %221 = vmatpush1.msra.mxu0 0.0
    %222 = vmatprep.subr.mxu0 0.0
    %223 = vmatpush1.msra.mxu0 0.0
    %224 = vmatprep.subr.mxu0 0.0
    %225 = vmatpush1.msra.mxu0 0.0
    %226 = vmatprep.subr.mxu0 0.0
    %227 = vmatpush1.msra.mxu0 0.0
    %228 = vmatprep.subr.mxu0 0.0
    %229 = vmatpush1.msra.mxu0 0.0
    %230 = vmatprep.mubr.f32.mxu0 0.0
    %231 = vmatmul.mubr.f32.gmra.mrb[0].mxu0 %v79
    %v232 = vpop.f32.mrb[0].mxu0
    %v233 = vadd.f32 0.0, %v232
    %v234 = vpop.f32.mrb[0].mxu0
    %235 = vmatprep.mubr.f32.mxu0 0.0
    %236 = vmatmul.mubr.f32.gmra.mrb[0].mxu0 %v82
    %v237 = vpop.f32.mrb[0].mxu0
    %v238 = vadd.f32 0.0, %v237
    %v239 = vpop.f32.mrb[0].mxu0
    %240 = vdwg.mxu0
    %241 = vst.msk [vmem:[%s6] sm:$0xff] %vm159, %v233
    %242 = vst.msk [vmem:[%s6 + $0x8] sm:$0xff] %vm159, %v238
    %v243 = vpack.c.bf16 %v70, %v67
    %v245 = vunpack.c.l.b16 %v243
    %v246 = vunpack.c.h.b16 %v243
    %v247 = vpack.c.b16 %v245, %v245
    %v248 = vpack.c.b16 %v246, %v246
    %vm251 = vcmask 257024
    %252 = vst.msk [vmem:[#allocation2] sm:$0xf] %vm251, %v247
    %253 = vst.msk [vmem:[#allocation2 + $0x4] sm:$0xf] %vm251, %v248
    // Predicated region
    $region18: #{tpu_custom_call.1} parent=1 // pred_check
      _
    $region19: #{tpu_custom_call.1} parent=1 // pred_check_branch
      %255 = sbr.rel (0) target = $region21
    $region20: #{tpu_custom_call.1} parent=1 // pred_region
      %s257 = ssub.s32 128, 128
      %258 = vsyncadd [#allocation3], %s257
      %s259 = sshll.u32 [#allocation2], 4
      %s260 = int_to_ptr.vmem [resolvable:$true] %s259
      %265 = dma.vmem_to_hbm [thread:$0]  %s260, 128, %s4, [#allocation3], 64, 64, 4
    $region21: #{tpu_custom_call.1} parent=1 // pred_fallthru
      _
    // Predicated region
    $region22: #{tpu_custom_call.1} parent=1 // pred_check
      _
    $region23: #{tpu_custom_call.1} parent=1 // pred_check_branch
      %267 = sbr.rel (0) target = $region25
    $region24: #{tpu_custom_call.1} parent=1 // pred_region
      _
    $region25: #{tpu_custom_call.1} parent=1 // pred_fallthru
      _
    // Predicated region
    $region26: #{tpu_custom_call.1} parent=1 // pred_check
      _
    $region27: #{tpu_custom_call.1} parent=1 // pred_check_branch
      %269 = sbr.rel (0) target = $region29
    $region28: #{tpu_custom_call.1} parent=1 // pred_region
      _
    $region29: #{tpu_custom_call.1} parent=1 // pred_fallthru
      _
    // Predicated region
    $region30: #{tpu_custom_call.1} parent=1 // pred_check
      _
    $region31: #{tpu_custom_call.1} parent=1 // pred_check_branch
      %271 = sbr.rel (0) target = $region33
    $region32: #{tpu_custom_call.1} parent=1 // pred_region
      %272 = dma.done [#allocation3], 128
    $region33: #{tpu_custom_call.1} parent=1 // pred_fallthru
      _
    // Predicated region
    $region34: #{tpu_custom_call.1} parent=1 // pred_check
      _
    $region35: #{tpu_custom_call.1} parent=1 // pred_check_branch
      %274 = sbr.rel (0) target = $region37
    $region36: #{tpu_custom_call.1} parent=1 // pred_region
      _
    $region37: #{tpu_custom_call.1} parent=1 // pred_fallthru
      _
    // Predicated region
    $region38: #{tpu_custom_call.1} parent=1 // pred_check
      _
    $region39: #{tpu_custom_call.1} parent=1 // pred_check_branch
      %276 = sbr.rel (0) target = $region41
    $region40: #{tpu_custom_call.1} parent=1 // pred_region
      _
    $region41: #{tpu_custom_call.1} parent=1 // pred_fallthru
      _
    %277 = vsyncpa [#allocation3], 1

</llo_original>
